<compile_context>
chip_gen: v7x
topology: tpu7x:2x2x1
jax: 0.10.0
libtpu: 0.0.40
codegen_flags: <defaults>
</compile_context>

<pallas_src>
import functools

import jax
import jax.numpy as jnp
from jax import lax
from jax.experimental import pallas as pl
from jax.experimental.pallas import tpu as pltpu


def _round_up(a, b):
    return (a + b - 1) // b * b


# ----------------------------------------------------------------------------
# Shared helper: accumulate shifted per-channel sum / sum-of-squares.
# Padded rows of the im2col slab produce exactly 0 in the (bias-free) conv output,
# but the shift `c` would leak in, so only the LAST tile is masked.
# ----------------------------------------------------------------------------
def _accum_shifted_stats(acc, c, sum_ref, sq_ref, i, nm, tm, m_true, need_mask):
    def accumulate(mask_rows):
        d = acc - c
        if mask_rows:
            row = i * tm + lax.broadcasted_iota(jnp.int32, d.shape, 0)
            d = jnp.where(row < m_true, d, 0.0)
        sum_ref[...] += jnp.sum(d, axis=0, keepdims=True)
        sq_ref[...] += jnp.sum(d * d, axis=0, keepdims=True)

    if need_mask:
        @pl.when(i == nm - 1)
        def _():
            accumulate(True)

        @pl.when(i != nm - 1)
        def _():
            accumulate(False)
    else:
        accumulate(False)


# ----------------------------------------------------------------------------
# Fused kernel: grid = (2 phases, grid_m).
#   phase 0: conv tile -> VMEM scratch, accumulate shifted stats, finalize BN
#            scale/shift on the last M tile.
#   phase 1: read conv tile from VMEM scratch, BN affine + LeakyReLU, write the
#            lane-dense output tile.
# ----------------------------------------------------------------------------
def _down_fused_kernel(p_ref, w_ref, gamma_ref, beta_ref, o_ref,
                       conv_scr, c_scr, sum_scr, sq_scr, scale_scr, shift_scr,
                       *, tm, m_true, inv_m, eps, need_mask):
    phase = pl.program_id(0)
    i = pl.program_id(1)
    nm = pl.num_programs(1)
    row0 = pl.multiple_of(i * tm, tm)

    @pl.when(phase == 0)
    def _():
        acc = jnp.dot(p_ref[...], w_ref[...], preferred_element_type=jnp.float32)
        conv_scr[pl.ds(row0, tm), :] = acc

        @pl.when(i == 0)
        def _():
            # Per-channel shift estimate (tile-0 mean). Any value works; keeping the
            # shifted sums small makes the one-pass variance numerically robust.
            c_scr[...] = jnp.sum(acc, axis=0, keepdims=True) * (1.0 / tm)
            sum_scr[...] = jnp.zeros_like(sum_scr)
            sq_scr[...] = jnp.zeros_like(sq_scr)

        c = c_scr[...]
        _accum_shifted_stats(acc, c, sum_scr, sq_scr, i, nm, tm, m_true, need_mask)

        @pl.when(i == nm - 1)
        def _():
            mean_d = sum_scr[...] * inv_m                        # E[y - c]
            var = jnp.maximum(sq_scr[...] * inv_m - mean_d * mean_d, 0.0)
            scale = gamma_ref[...] * lax.rsqrt(var + eps)
            scale_scr[...] = scale
            shift_scr[...] = beta_ref[...] - (c_scr[...] + mean_d) * scale

    @pl.when(phase == 1)
    def _():
        y = conv_scr[pl.ds(row0, tm), :] * scale_scr[...] + shift_scr[...]
        o_ref[...] = jnp.where(y >= 0.0, y, 0.01 * y)


# ----------------------------------------------------------------------------
# Fallback kernels (activation too large for a VMEM-resident scratch):
#   kernel A: conv-as-matmul + shifted stats;  kernel B: BN affine + LeakyReLU
#   (applied in place on the conv_out buffer via input_output_aliases).
# ----------------------------------------------------------------------------
def _conv_stats_kernel(p_ref, w_ref, o_ref, sum_ref, sq_ref, c_ref,
                       *, tm, m_true, need_mask):
    i = pl.program_id(0)
    nm = pl.num_programs(0)
    acc = jnp.dot(p_ref[...], w_ref[...], preferred_element_type=jnp.float32)
    o_ref[...] = acc

    @pl.when(i == 0)
    def _():
        c_ref[...] = jnp.sum(acc, axis=0, keepdims=True) * (1.0 / tm)
        sum_ref[...] = jnp.zeros_like(sum_ref)
        sq_ref[...] = jnp.zeros_like(sq_ref)

    _accum_shifted_stats(acc, c_ref[...], sum_ref, sq_ref, i, nm, tm, m_true, need_mask)


def _bn_leaky_kernel(x_ref, scale_ref, shift_ref, o_ref):
    y = x_ref[...] * scale_ref[...] + shift_ref[...]
    o_ref[...] = jnp.where(y >= 0.0, y, 0.01 * y)


# ----------------------------------------------------------------------------
# Wrapper
# ----------------------------------------------------------------------------
def down_forward(x_nchw, weight, bias, gamma, beta, *, eps=1e-5):
    """Down.forward: conv(k=3, pad=1, stride=2) -> BN (batch stats) -> LeakyReLU(0.01).

    x_nchw: (N, Cin, H, W) f32   weight: (Cout, Cin, 3, 3)   bias/gamma/beta: (Cout,)
    Returns (N, Cout, H//2, W//2) f32.  The conv bias is unused: under training-mode
    BatchNorm it cancels exactly (the batch mean absorbs it).
    """
    del bias
    N, Cin, H, W = x_nchw.shape
    Cout, _, kh, kw = weight.shape
    stride, pad = 2, 1
    Ho = (H + 2 * pad - kh) // stride + 1
    Wo = (W + 2 * pad - kw) // stride + 1
    K = kh * kw * Cin
    M = N * Ho * Wo

    # ---- glue: NCHW -> NHWC, zero-pad, im2col (kh,kw outer; Cin inner), bf16 ----
    # TODO(synk): feed the padded NHWC input directly (9 per-tap matmuls with strided
    # in-kernel loads) to avoid materializing the im2col slab (~2.25x input bytes) in HBM.
    x = jnp.transpose(x_nchw, (0, 2, 3, 1)).astype(jnp.float32)
    xp = jnp.pad(x, ((0, 0), (pad, pad), (pad, pad), (0, 0)))
    taps = []
    for ih in range(kh):
        for iw in range(kw):
            taps.append(xp[:, ih:ih + stride * Ho:stride, iw:iw + stride * Wo:stride, :])
    patches = jnp.concatenate(taps, axis=-1).reshape(M, K).astype(jnp.bfloat16)

    # ---- lane-dense output channels (round Cout up to 128) ----
    Cout_pad = _round_up(Cout, 128)
    w2 = jnp.transpose(weight, (2, 3, 1, 0)).reshape(K, Cout).astype(jnp.bfloat16)
    w2 = jnp.pad(w2, ((0, 0), (0, Cout_pad - Cout)))
    gamma_p = jnp.pad(gamma.astype(jnp.float32), (0, Cout_pad - Cout)).reshape(1, Cout_pad)
    beta_p = jnp.pad(beta.astype(jnp.float32), (0, Cout_pad - Cout)).reshape(1, Cout_pad)

    # ---- M tiling: large tiles (<=1024 rows) sized against an explicit VMEM budget ----
    def _tile_vmem(t):
        return (2 * t * _round_up(K, 128) * 2           # double-buffered bf16 patch tiles
                + 2 * t * Cout_pad * 4                  # double-buffered f32 out tiles
                + 2 * _round_up(K, 16) * Cout_pad * 2   # resident bf16 weights
                + 16 * 8 * Cout_pad * 4)                # per-channel params / stats

    tm = min(1024, _round_up(M, 8))
    while tm > 128 and _tile_vmem(tm) > 24 * 1024 * 1024:
        tm = _round_up(tm // 2, 8)
    m_pad = _round_up(M, tm)
    if m_pad != M:
        patches = jnp.pad(patches, ((0, m_pad - M), (0, 0)))
    grid_m = m_pad // tm
    need_mask = m_pad != M

    fused_scratch = m_pad * Cout_pad * 4
    fused = fused_scratch + _tile_vmem(tm) <= 44 * 1024 * 1024   # safe on v5e/v6e/v7x
    vmem_need = _tile_vmem(tm) + (fused_scratch if fused else 0)
    vmem_limit = int(min(60 * 1024 * 1024, vmem_need + 8 * 1024 * 1024))

    if fused:
        # Single pallas_call; the f32 conv activation lives only in VMEM.
        # TODO(synk): on v7x (2 TCs) this serializes onto one core; a per-core split of
        # the stats pass would need per-core accumulators + a combine step.
        out_padded = pl.pallas_call(
            functools.partial(_down_fused_kernel, tm=tm, m_true=M, inv_m=1.0 / M,
                              eps=float(eps), need_mask=need_mask),
            out_shape=jax.ShapeDtypeStruct((m_pad, Cout_pad), jnp.float32),
            grid_spec=pltpu.PrefetchScalarGridSpec(
                num_scalar_prefetch=0,
                grid=(2, grid_m),                                     # (phase, M tile)
                in_specs=[
                    pl.BlockSpec((tm, K), lambda p, i: (i * (1 - p), 0)),   # patches
                    pl.BlockSpec((K, Cout_pad), lambda p, i: (0, 0)),       # weights
                    pl.BlockSpec((1, Cout_pad), lambda p, i: (0, 0)),       # gamma
                    pl.BlockSpec((1, Cout_pad), lambda p, i: (0, 0)),       # beta
                ],
                out_specs=pl.BlockSpec((tm, Cout_pad), lambda p, i: (i * p, 0)),
                scratch_shapes=[
                    pltpu.VMEM((m_pad, Cout_pad), jnp.float32),  # resident conv activation
                    pltpu.VMEM((1, Cout_pad), jnp.float32),      # shift estimate c
                    pltpu.VMEM((1, Cout_pad), jnp.float32),      # sum(y - c)
                    pltpu.VMEM((1, Cout_pad), jnp.float32),      # sum((y - c)^2)
                    pltpu.VMEM((1, Cout_pad), jnp.float32),      # BN scale
                    pltpu.VMEM((1, Cout_pad), jnp.float32),      # BN shift
                ],
            ),
            compiler_params=pltpu.CompilerParams(
                dimension_semantics=("arbitrary", "arbitrary"),
                vmem_limit_bytes=vmem_limit),
        )(patches, w2, gamma_p, beta_p)
    else:
        conv_out, col_sum, col_sq, col_c = pl.pallas_call(
            functools.partial(_conv_stats_kernel, tm=tm, m_true=M, need_mask=need_mask),
            out_shape=(
                jax.ShapeDtypeStruct((m_pad, Cout_pad), jnp.float32),
                jax.ShapeDtypeStruct((1, Cout_pad), jnp.float32),
                jax.ShapeDtypeStruct((1, Cout_pad), jnp.float32),
                jax.ShapeDtypeStruct((1, Cout_pad), jnp.float32),
            ),
            grid_spec=pltpu.PrefetchScalarGridSpec(
                num_scalar_prefetch=0,
                grid=(grid_m,),
                in_specs=[
                    pl.BlockSpec((tm, K), lambda i: (i, 0)),
                    pl.BlockSpec((K, Cout_pad), lambda i: (0, 0)),
                ],
                out_specs=[
                    pl.BlockSpec((tm, Cout_pad), lambda i: (i, 0)),
                    pl.BlockSpec((1, Cout_pad), lambda i: (0, 0)),   # resident accumulators
                    pl.BlockSpec((1, Cout_pad), lambda i: (0, 0)),
                    pl.BlockSpec((1, Cout_pad), lambda i: (0, 0)),
                ],
            ),
            compiler_params=pltpu.CompilerParams(
                dimension_semantics=("arbitrary",),
                vmem_limit_bytes=vmem_limit),
        )(patches, w2)

        mean_d = col_sum * (1.0 / M)
        var = jnp.maximum(col_sq * (1.0 / M) - mean_d * mean_d, 0.0)
        scale = gamma_p * lax.rsqrt(var + eps)
        shift = beta_p - (col_c + mean_d) * scale

        out_padded = pl.pallas_call(
            _bn_leaky_kernel,
            out_shape=jax.ShapeDtypeStruct((m_pad, Cout_pad), jnp.float32),
            grid_spec=pltpu.PrefetchScalarGridSpec(
                num_scalar_prefetch=0,
                grid=(grid_m,),
                in_specs=[
                    pl.BlockSpec((tm, Cout_pad), lambda i: (i, 0)),
                    pl.BlockSpec((1, Cout_pad), lambda i: (0, 0)),
                    pl.BlockSpec((1, Cout_pad), lambda i: (0, 0)),
                ],
                out_specs=pl.BlockSpec((tm, Cout_pad), lambda i: (i, 0)),
            ),
            input_output_aliases={0: 0},   # BN + LeakyReLU in place over conv_out
            compiler_params=pltpu.CompilerParams(
                dimension_semantics=("parallel",),
                vmem_limit_bytes=vmem_limit),
        )(conv_out, scale, shift)

    out = out_padded[:M, :Cout].reshape(N, Ho, Wo, Cout)
    # TODO(synk): drop this transpose (and the input one) if the surrounding model can
    # consume NHWC; each is a full extra HBM pass over the activation.
    return jnp.transpose(out, (0, 3, 1, 2))                              # NCHW


# ----------------------------------------------------------------------------
# Pure-JAX reference (mirrors PyTorch Down forward in training mode, f32)
# ----------------------------------------------------------------------------
def down_reference(x, weight, bias, gamma, beta, *, eps=1e-5):
    y = lax.conv_general_dilated(
        x, weight, window_strides=(2, 2), padding=[(1, 1), (1, 1)],
        dimension_numbers=("NCHW", "OIHW", "NCHW"),
        precision=lax.Precision.HIGHEST)
    y = y + bias.reshape(1, -1, 1, 1)
    mean = jnp.mean(y, axis=(0, 2, 3), keepdims=True)
    var = jnp.mean((y - mean) ** 2, axis=(0, 2, 3), keepdims=True)
    y = (y - mean) * lax.rsqrt(var + eps)
    y = y * gamma.reshape(1, -1, 1, 1) + beta.reshape(1, -1, 1, 1)
    return jnp.where(y >= 0.0, y, 0.01 * y)


if __name__ == "__main__":
    key = jax.random.PRNGKey(0)
    kx, kw_, kb, kg, kbt = jax.random.split(key, 5)

    N, Cin, H, W = 2, 4, 16, 16
    Cout, ksz = 8, 3

    x = jax.random.normal(kx, (N, Cin, H, W), dtype=jnp.float32)
    weight = 0.1 * jax.random.normal(kw_, (Cout, Cin, ksz, ksz), dtype=jnp.float32)
    bias = 0.1 * jax.random.normal(kb, (Cout,), dtype=jnp.float32)
    gamma = 1.0 + 0.1 * jax.random.normal(kg, (Cout,), dtype=jnp.float32)
    beta = 0.1 * jax.random.normal(kbt, (Cout,), dtype=jnp.float32)

    down = jax.jit(down_forward)
    out = jax.block_until_ready(down(x, weight, bias, gamma, beta))
    assert out.shape == (N, Cout, H // 2, W // 2), out.shape

    # Tight check: reference whose conv inputs are rounded through bf16 like the kernel's.
    xb = x.astype(jnp.bfloat16).astype(jnp.float32)
    wb = weight.astype(jnp.bfloat16).astype(jnp.float32)
    ref_b = down_reference(xb, wb, bias, gamma, beta)
    assert jnp.allclose(out, ref_b, atol=2e-3, rtol=2e-3), \
        float(jnp.max(jnp.abs(out - ref_b)))

    # Loose check against the exact f32 PyTorch semantics (gap = bf16 MXU inputs).
    ref = down_reference(x, weight, bias, gamma, beta)
    assert jnp.allclose(out, ref, atol=5e-2, rtol=5e-2), \
        float(jnp.max(jnp.abs(out - ref)))

    print("KERNEL_OK")
</pallas_src>

<mosaic_0001>
module attributes {stable_mosaic.version = 11 : i64} {
  func.func @_down_fused_kernel(%arg0: i32, %arg1: i32, %arg2: memref<128x36xbf16, #tpu.memory_space<vmem>>, %arg3: memref<36x128xbf16, #tpu.memory_space<vmem>>, %arg4: memref<1x128xf32, #tpu.memory_space<vmem>>, %arg5: memref<1x128xf32, #tpu.memory_space<vmem>>, %arg6: memref<128x128xf32, #tpu.memory_space<vmem>>, %arg7: memref<128x128xf32, #tpu.memory_space<vmem>>, %arg8: memref<1x128xf32, #tpu.memory_space<vmem>>, %arg9: memref<1x128xf32, #tpu.memory_space<vmem>>, %arg10: memref<1x128xf32, #tpu.memory_space<vmem>>, %arg11: memref<1x128xf32, #tpu.memory_space<vmem>>, %arg12: memref<1x128xf32, #tpu.memory_space<vmem>>) attributes {dimension_semantics = [#tpu.dimension_semantics<arbitrary>, #tpu.dimension_semantics<arbitrary>], iteration_bounds = array<i64: 2, 1>, scalar_prefetch = 0 : i64, scratch_operands = 6 : i64, tpu.core_type = #tpu.core_type<tc>, window_params = [{transform_indices = @transform_0, window_bounds = array<i64: 128, 36>}, {pipeline_mode = #tpu.pipeline_mode<synchronous>, transform_indices = @transform_1, window_bounds = array<i64: 36, 128>}, {pipeline_mode = #tpu.pipeline_mode<synchronous>, transform_indices = @transform_2, window_bounds = array<i64: 1, 128>}, {pipeline_mode = #tpu.pipeline_mode<synchronous>, transform_indices = @transform_3, window_bounds = array<i64: 1, 128>}, {transform_indices = @transform_4, window_bounds = array<i64: 128, 128>}]} {
    %c128_i32 = arith.constant 128 : i32
    %0 = arith.muli %arg1, %c128_i32 : i32
    %1 = tpu.assume_multiple %0, 128 : i32
    %c0_i32 = arith.constant 0 : i32
    %2 = arith.cmpi eq, %arg0, %c0_i32 : i32
    %3 = arith.extui %2 : i1 to i32
    %c0_i32_0 = arith.constant 0 : i32
    %4 = arith.cmpi ne, %3, %c0_i32_0 : i32
    scf.if %4 {
      %c0 = arith.constant 0 : index
      %c0_2 = arith.constant 0 : index
      %8 = vector.load %arg2[%c0, %c0_2] : memref<128x36xbf16, #tpu.memory_space<vmem>>, vector<128x36xbf16>
      %c0_3 = arith.constant 0 : index
      %c0_4 = arith.constant 0 : index
      %9 = vector.load %arg3[%c0_3, %c0_4] : memref<36x128xbf16, #tpu.memory_space<vmem>>, vector<36x128xbf16>
      %cst = arith.constant dense<0.000000e+00> : vector<128x128xf32>
      %10 = tpu.matmul %8, %9, %cst {dimension_numbers = #tpu.dot_dimension_numbers<[1], [0], [0], [1], [0, 0, 1, 1], [], []>} : vector<128x36xbf16>, vector<36x128xbf16>, vector<128x128xf32> -> vector<128x128xf32>
      %11 = arith.index_cast %1 : i32 to index
      %c0_5 = arith.constant 0 : index
      %12 = vector.load %arg7[%11, %c0_5] : memref<128x128xf32, #tpu.memory_space<vmem>>, vector<128x128xf32>
      tpu.vector_store %arg7[%11, %c0_5], %10 {strides = array<i32>} : memref<128x128xf32, #tpu.memory_space<vmem>>, vector<128x128xf32>,
      %c0_i32_6 = arith.constant 0 : i32
      %13 = arith.cmpi eq, %arg1, %c0_i32_6 : i32
      %14 = arith.extui %13 : i1 to i32
      %c0_i32_7 = arith.constant 0 : i32
      %15 = arith.cmpi ne, %14, %c0_i32_7 : i32
      scf.if %15 {
        %cst_22 = arith.constant dense<0.000000e+00> : vector<128xf32>
        %33 = vector.multi_reduction <add>, %10, %cst_22 [0] : vector<128x128xf32> to vector<128xf32>
        %34 = vector.shape_cast %33 : vector<128xf32> to vector<1x128xf32>
        %cst_23 = arith.constant 7.812500e-03 : f32
        %35 = vector.broadcast %cst_23 : f32 to vector<1x128xf32>
        %36 = arith.mulf %34, %35 : vector<1x128xf32>
        %c0_24 = arith.constant 0 : index
        %c0_25 = arith.constant 0 : index
        %37 = vector.load %arg8[%c0_24, %c0_25] : memref<1x128xf32, #tpu.memory_space<vmem>>, vector<1x128xf32>
        tpu.vector_store %arg8[%c0_24, %c0_25], %36 {strides = array<i32>} : memref<1x128xf32, #tpu.memory_space<vmem>>, vector<1x128xf32>,
        %cst_26 = arith.constant 0.000000e+00 : f32
        %38 = vector.broadcast %cst_26 : f32 to vector<1x128xf32>
        %c0_27 = arith.constant 0 : index
        %c0_28 = arith.constant 0 : index
        %39 = vector.load %arg9[%c0_27, %c0_28] : memref<1x128xf32, #tpu.memory_space<vmem>>, vector<1x128xf32>
        tpu.vector_store %arg9[%c0_27, %c0_28], %38 {strides = array<i32>} : memref<1x128xf32, #tpu.memory_space<vmem>>, vector<1x128xf32>,
        %cst_29 = arith.constant 0.000000e+00 : f32
        %40 = vector.broadcast %cst_29 : f32 to vector<1x128xf32>
        %c0_30 = arith.constant 0 : index
        %c0_31 = arith.constant 0 : index
        %41 = vector.load %arg10[%c0_30, %c0_31] : memref<1x128xf32, #tpu.memory_space<vmem>>, vector<1x128xf32>
        tpu.vector_store %arg10[%c0_30, %c0_31], %40 {strides = array<i32>} : memref<1x128xf32, #tpu.memory_space<vmem>>, vector<1x128xf32>,
      } else {
      }
      %c0_8 = arith.constant 0 : index
      %c0_9 = arith.constant 0 : index
      %16 = vector.load %arg8[%c0_8, %c0_9] : memref<1x128xf32, #tpu.memory_space<vmem>>, vector<1x128xf32>
      %17 = vector.broadcast %16 : vector<1x128xf32> to vector<128x128xf32>
      %18 = arith.subf %10, %17 : vector<128x128xf32>
      %c0_10 = arith.constant 0 : index
      %c0_11 = arith.constant 0 : index
      %19 = vector.load %arg9[%c0_10, %c0_11] : memref<1x128xf32, #tpu.memory_space<vmem>>, vector<1x128xf32>
      %cst_12 = arith.constant dense<0.000000e+00> : vector<128xf32>
      %20 = vector.multi_reduction <add>, %18, %cst_12 [0] : vector<128x128xf32> to vector<128xf32>
      %21 = vector.shape_cast %20 : vector<128xf32> to vector<1x128xf32>
      %22 = arith.addf %19, %21 : vector<1x128xf32>
      %c0_13 = arith.constant 0 : index
      %c0_14 = arith.constant 0 : index
      %23 = vector.load %arg9[%c0_13, %c0_14] : memref<1x128xf32, #tpu.memory_space<vmem>>, vector<1x128xf32>
      tpu.vector_store %arg9[%c0_13, %c0_14], %22 {strides = array<i32>} : memref<1x128xf32, #tpu.memory_space<vmem>>, vector<1x128xf32>,
      %c0_15 = arith.constant 0 : index
      %c0_16 = arith.constant 0 : index
      %24 = vector.load %arg10[%c0_15, %c0_16] : memref<1x128xf32, #tpu.memory_space<vmem>>, vector<1x128xf32>
      %25 = arith.mulf %18, %18 : vector<128x128xf32>
      %cst_17 = arith.constant dense<0.000000e+00> : vector<128xf32>
      %26 = vector.multi_reduction <add>, %25, %cst_17 [0] : vector<128x128xf32> to vector<128xf32>
      %27 = vector.shape_cast %26 : vector<128xf32> to vector<1x128xf32>
      %28 = arith.addf %24, %27 : vector<1x128xf32>
      %c0_18 = arith.constant 0 : index
      %c0_19 = arith.constant 0 : index
      %29 = vector.load %arg10[%c0_18, %c0_19] : memref<1x128xf32, #tpu.memory_space<vmem>>, vector<1x128xf32>
      tpu.vector_store %arg10[%c0_18, %c0_19], %28 {strides = array<i32>} : memref<1x128xf32, #tpu.memory_space<vmem>>, vector<1x128xf32>,
      %c0_i32_20 = arith.constant 0 : i32
      %30 = arith.cmpi eq, %arg1, %c0_i32_20 : i32
      %31 = arith.extui %30 : i1 to i32
      %c0_i32_21 = arith.constant 0 : i32
      %32 = arith.cmpi ne, %31, %c0_i32_21 : i32
      scf.if %32 {
        %c0_22 = arith.constant 0 : index
        %c0_23 = arith.constant 0 : index
        %33 = vector.load %arg9[%c0_22, %c0_23] : memref<1x128xf32, #tpu.memory_space<vmem>>, vector<1x128xf32>
        %cst_24 = arith.constant 7.812500e-03 : f32
        %34 = vector.broadcast %cst_24 : f32 to vector<1x128xf32>
        %35 = arith.mulf %33, %34 : vector<1x128xf32>
        %c0_25 = arith.constant 0 : index
        %c0_26 = arith.constant 0 : index
        %36 = vector.load %arg10[%c0_25, %c0_26] : memref<1x128xf32, #tpu.memory_space<vmem>>, vector<1x128xf32>
        %cst_27 = arith.constant 7.812500e-03 : f32
        %37 = vector.broadcast %cst_27 : f32 to vector<1x128xf32>
        %38 = arith.mulf %36, %37 : vector<1x128xf32>
        %39 = arith.mulf %35, %35 : vector<1x128xf32>
        %40 = arith.subf %38, %39 : vector<1x128xf32>
        %cst_28 = arith.constant 0.000000e+00 : f32
        %41 = vector.broadcast %cst_28 : f32 to vector<1x128xf32>
        %42 = arith.maximumf %40, %41 : vector<1x128xf32>
        %c0_29 = arith.constant 0 : index
        %c0_30 = arith.constant 0 : index
        %43 = vector.load %arg4[%c0_29, %c0_30] : memref<1x128xf32, #tpu.memory_space<vmem>>, vector<1x128xf32>
        %cst_31 = arith.constant 9.99999974E-6 : f32
        %44 = vector.broadcast %cst_31 : f32 to vector<1x128xf32>
        %45 = arith.addf %42, %44 : vector<1x128xf32>
        %46 = math.rsqrt %45 : vector<1x128xf32>
        %47 = arith.mulf %43, %46 : vector<1x128xf32>
        %c0_32 = arith.constant 0 : index
        %c0_33 = arith.constant 0 : index
        %48 = vector.load %arg11[%c0_32, %c0_33] : memref<1x128xf32, #tpu.memory_space<vmem>>, vector<1x128xf32>
        tpu.vector_store %arg11[%c0_32, %c0_33], %47 {strides = array<i32>} : memref<1x128xf32, #tpu.memory_space<vmem>>, vector<1x128xf32>,
        %c0_34 = arith.constant 0 : index
        %c0_35 = arith.constant 0 : index
        %49 = vector.load %arg5[%c0_34, %c0_35] : memref<1x128xf32, #tpu.memory_space<vmem>>, vector<1x128xf32>
        %c0_36 = arith.constant 0 : index
        %c0_37 = arith.constant 0 : index
        %50 = vector.load %arg8[%c0_36, %c0_37] : memref<1x128xf32, #tpu.memory_space<vmem>>, vector<1x128xf32>
        %51 = arith.addf %50, %35 : vector<1x128xf32>
        %52 = arith.mulf %51, %47 : vector<1x128xf32>
        %53 = arith.subf %49, %52 : vector<1x128xf32>
        %c0_38 = arith.constant 0 : index
        %c0_39 = arith.constant 0 : index
        %54 = vector.load %arg12[%c0_38, %c0_39] : memref<1x128xf32, #tpu.memory_space<vmem>>, vector<1x128xf32>
        tpu.vector_store %arg12[%c0_38, %c0_39], %53 {strides = array<i32>} : memref<1x128xf32, #tpu.memory_space<vmem>>, vector<1x128xf32>,
      } else {
      }
    } else {
    }
    %c1_i32 = arith.constant 1 : i32
    %5 = arith.cmpi eq, %arg0, %c1_i32 : i32
    %6 = arith.extui %5 : i1 to i32
    %c0_i32_1 = arith.constant 0 : i32
    %7 = arith.cmpi ne, %6, %c0_i32_1 : i32
    scf.if %7 {
      %8 = arith.index_cast %1 : i32 to index
      %c0 = arith.constant 0 : index
      %9 = vector.load %arg7[%8, %c0] : memref<128x128xf32, #tpu.memory_space<vmem>>, vector<128x128xf32>
      %c0_2 = arith.constant 0 : index
      %c0_3 = arith.constant 0 : index
      %10 = vector.load %arg11[%c0_2, %c0_3] : memref<1x128xf32, #tpu.memory_space<vmem>>, vector<1x128xf32>
      %11 = vector.broadcast %10 : vector<1x128xf32> to vector<128x128xf32>
      %12 = arith.mulf %9, %11 : vector<128x128xf32>
      %c0_4 = arith.constant 0 : index
      %c0_5 = arith.constant 0 : index
      %13 = vector.load %arg12[%c0_4, %c0_5] : memref<1x128xf32, #tpu.memory_space<vmem>>, vector<1x128xf32>
      %14 = vector.broadcast %13 : vector<1x128xf32> to vector<128x128xf32>
      %15 = arith.addf %12, %14 : vector<128x128xf32>
      %cst = arith.constant 0.000000e+00 : f32
      %16 = vector.broadcast %cst : f32 to vector<128x128xf32>
      %17 = arith.cmpf oge, %15, %16 : vector<128x128xf32>
      %cst_6 = arith.constant 0.00999999977 : f32
      %18 = vector.broadcast %cst_6 : f32 to vector<128x128xf32>
      %19 = arith.mulf %18, %15 : vector<128x128xf32>
      %20 = arith.select %17, %15, %19 : vector<128x128xi1>, vector<128x128xf32>
      %c0_7 = arith.constant 0 : index
      %c0_8 = arith.constant 0 : index
      %21 = vector.load %arg6[%c0_7, %c0_8] : memref<128x128xf32, #tpu.memory_space<vmem>>, vector<128x128xf32>
      tpu.vector_store %arg6[%c0_7, %c0_8], %20 {strides = array<i32>} : memref<128x128xf32, #tpu.memory_space<vmem>>, vector<128x128xf32>,
    } else {
    }
    return
  }
  func.func @transform_0(%arg0: i32, %arg1: i32) -> (i32, i32) {
    %c1_i32 = arith.constant 1 : i32
    %0 = arith.subi %c1_i32, %arg0 : i32
    %1 = arith.muli %arg1, %0 : i32
    %c0_i32 = arith.constant 0 : i32
    %c0_i32_0 = arith.constant 0 : i32
    return %1, %c0_i32 : i32, i32
  }
  func.func @transform_1(%arg0: i32, %arg1: i32) -> (i32, i32) {
    %c0_i32 = arith.constant 0 : i32
    %c0_i32_0 = arith.constant 0 : i32
    %c0_i32_1 = arith.constant 0 : i32
    return %c0_i32, %c0_i32_0 : i32, i32
  }
  func.func @transform_2(%arg0: i32, %arg1: i32) -> (i32, i32) {
    %c0_i32 = arith.constant 0 : i32
    %c0_i32_0 = arith.constant 0 : i32
    %c0_i32_1 = arith.constant 0 : i32
    return %c0_i32, %c0_i32_0 : i32, i32
  }
  func.func @transform_3(%arg0: i32, %arg1: i32) -> (i32, i32) {
    %c0_i32 = arith.constant 0 : i32
    %c0_i32_0 = arith.constant 0 : i32
    %c0_i32_1 = arith.constant 0 : i32
    return %c0_i32, %c0_i32_0 : i32, i32
  }
  func.func @transform_4(%arg0: i32, %arg1: i32) -> (i32, i32) {
    %0 = arith.muli %arg1, %arg0 : i32
    %c0_i32 = arith.constant 0 : i32
    %c0_i32_0 = arith.constant 0 : i32
    return %0, %c0_i32 : i32, i32
  }
}

</mosaic_0001>

<llo_original>
// kernel: down_forward.1
$region0: #{down_forward.1}
  #allocation0 [shape = 'u32[]', space=smem, size = 0x4, offset = 0x4, fixed_abs, tag = 'smem constant byte address 0x4 - core index']
  #allocation1 [shape = 'u32[144,128]{1,0:T(1,128)}', space=vmem, size = 0x12000, scoped, tag = 'internal scratch']
  #allocation2 [shape = 'f32[128,128]{1,0:T(8,128)}', space=vmem, size = 0x10000, scoped, tag = 'scratch operand']
  #allocation3 [shape = 'f32[1,128]{1,0:T(1,128)}', space=vmem, size = 0x200, scoped, tag = 'scratch operand']
  #allocation4 [shape = 'f32[1,128]{1,0:T(1,128)}', space=vmem, size = 0x200, scoped, tag = 'scratch operand']
  #allocation5 [shape = 'f32[1,128]{1,0:T(1,128)}', space=vmem, size = 0x200, scoped, tag = 'scratch operand']
  #allocation6 [shape = 'f32[1,128]{1,0:T(1,128)}', space=vmem, size = 0x200, scoped, tag = 'scratch operand']
  #allocation7 [shape = 'f32[1,128]{1,0:T(1,128)}', space=vmem, size = 0x200, scoped, tag = 'scratch operand']
  %s0 = inlined_call_operand.vmem [shape: bf16[128,36], index: 0, kind: input, shape index: {}]
  %s1 = inlined_call_operand.vmem [shape: bf16[36,128], index: 1, kind: input, shape index: {}]
  %s2 = inlined_call_operand.vmem [shape: f32[1,128], index: 2, kind: input, shape index: {}]
  %s3 = inlined_call_operand.vmem [shape: f32[1,128], index: 3, kind: input, shape index: {}]
  %s4 = inlined_call_operand.vmem [shape: f32[128,128], index: 4, kind: output, shape index: {}]
  %s5 = sld [smem:[#allocation0]]
  $region65: #{down_forward.1} parent=0
    _
  %s7 = ssub.s32 1, %s5
  %s8 = scalar_select 0, %s7, %s5
  loop: start=0, step=1, limit=4
  $region2: #{down_forward.1} parent=0 // loop_pre_header
    _
  $region3: #{down_forward.1} parent=0 // loop_header
    %s10 = sphi 0, %s14
    %p11 = scmp.ge.s32.totalorder %s10, 4
    %s17 = sphi 0, %s29
    %s18 = sphi 0, %s25
    %s19 = sphi 0, %s17
    %s20 = sphi 0, %s18
    %s21 = sphi 0, %s19
    %s22 = sphi 0, %s20
    %s36 = sphi 0, %s38
    %s39 = sphi 0, %s36
    %s40 = sphi 0, %s39
    %s56 = sphi 0, %s40
    %s60 = sphi 0, %s60
    %s62 = sphi 0, %s60
    %s63 = sphi 0, %s62
    %s77 = sphi 0, %s63
    %s81 = sphi 0, %s81
    %s83 = sphi 0, %s81
    %s84 = sphi 0, %s83
    %s98 = sphi 0, %s84
    %s102 = sphi 0, %s102
    %s104 = sphi 0, %s102
    %s105 = sphi 0, %s104
    %s119 = sphi 0, %s105
    %s127 = sphi 0, %s129
    %s130 = sphi 0, %s127
    %s131 = sphi 0, %s130
    %s147 = sphi 0, %s131
  $region4: #{down_forward.1} parent=0 // loop_header_branch
    %13 = sbr.rel (%p11) target = $region8
  $region5: #{down_forward.1} parent=0 // loop_body
    %s15 = ssub.s32 %s10, 1
    %s16 = ssub.s32 %s10, 2
    %s23 = sadd.s32 1, %s18
    %p24 = scmp.ge.s32.totalorder %s23, 1
    %s25 = scalar_select %p24, 0, %s23
    %s26 = sadd.s32 1, %s17
    %s27 = scalar_select %p24, %s26, %s17
    %p28 = scmp.ge.s32.totalorder %s27, 2
    %s29 = scalar_select %p28, 0, %s27
    %s30 = ssub.s32 1, %s17
    %s31 = smul.u32 %s18, %s30
    %s32 = ssub.s32 1, %s29
    %s33 = smul.u32 %s25, %s32
    %s34 = ssub.s32 %s31, %s33
    %p35 = scmp.eq.s32.totalorder %s34, 0
    %s37 = sadd.s32 %s36, 1
    %s38 = scalar_select %p35, %s36, %s37
    %p41 = pneg %p35
    %p42 = scmp.eq.s32.totalorder %s10, 1
    %p43 = por %p41, %p42
    %p44 = scmp.ne.s32.totalorder %s36, %s39
    %p45 = scmp.eq.s32.totalorder %s10, 0
    %p46 = por %p44, %p45
    %p47 = scmp.ne.s32.totalorder %s36, %s39
    %p48 = scmp.eq.s32.totalorder %s15, 1
    %p49 = por %p47, %p48
    %p50 = scmp.ne.s32.totalorder %s39, %s40
    %p51 = scmp.eq.s32.totalorder %s15, 0
    %p52 = por %p50, %p51
    %p53 = scmp.ne.s32.totalorder %s39, %s40
    %p54 = scmp.eq.s32.totalorder %s16, 1
    %p55 = por %p53, %p54
    %p57 = scmp.ne.s32.totalorder %s40, %s56
    %p58 = scmp.eq.s32.totalorder %s16, 0
    %p59 = por %p57, %p58
    %s61 = sadd.s32 %s60, 1
    %p64 = scmp.eq.s32.totalorder %s10, 1
    %p65 = scmp.ne.s32.totalorder %s60, %s62
    %p66 = scmp.eq.s32.totalorder %s10, 0
    %p67 = por %p65, %p66
    %p68 = scmp.ne.s32.totalorder %s60, %s62
    %p69 = scmp.eq.s32.totalorder %s15, 1
    %p70 = por %p68, %p69
    %p71 = scmp.ne.s32.totalorder %s62, %s63
    %p72 = scmp.eq.s32.totalorder %s15, 0
    %p73 = por %p71, %p72
    %p74 = scmp.ne.s32.totalorder %s62, %s63
    %p75 = scmp.eq.s32.totalorder %s16, 1
    %p76 = por %p74, %p75
    %p78 = scmp.ne.s32.totalorder %s63, %s77
    %p79 = scmp.eq.s32.totalorder %s16, 0
    %p80 = por %p78, %p79
    %s82 = sadd.s32 %s81, 1
    %p85 = scmp.eq.s32.totalorder %s10, 1
    %p86 = scmp.ne.s32.totalorder %s81, %s83
    %p87 = scmp.eq.s32.totalorder %s10, 0
    %p88 = por %p86, %p87
    %p89 = scmp.ne.s32.totalorder %s81, %s83
    %p90 = scmp.eq.s32.totalorder %s15, 1
    %p91 = por %p89, %p90
    %p92 = scmp.ne.s32.totalorder %s83, %s84
    %p93 = scmp.eq.s32.totalorder %s15, 0
    %p94 = por %p92, %p93
    %p95 = scmp.ne.s32.totalorder %s83, %s84
    %p96 = scmp.eq.s32.totalorder %s16, 1
    %p97 = por %p95, %p96
    %p99 = scmp.ne.s32.totalorder %s84, %s98
    %p100 = scmp.eq.s32.totalorder %s16, 0
    %p101 = por %p99, %p100
    %s103 = sadd.s32 %s102, 1
    %p106 = scmp.eq.s32.totalorder %s10, 1
    %p107 = scmp.ne.s32.totalorder %s102, %s104
    %p108 = scmp.eq.s32.totalorder %s10, 0
    %p109 = por %p107, %p108
    %p110 = scmp.ne.s32.totalorder %s102, %s104
    %p111 = scmp.eq.s32.totalorder %s15, 1
    %p112 = por %p110, %p111
    %p113 = scmp.ne.s32.totalorder %s104, %s105
    %p114 = scmp.eq.s32.totalorder %s15, 0
    %p115 = por %p113, %p114
    %p116 = scmp.ne.s32.totalorder %s104, %s105
    %p117 = scmp.eq.s32.totalorder %s16, 1
    %p118 = por %p116, %p117
    %p120 = scmp.ne.s32.totalorder %s105, %s119
    %p121 = scmp.eq.s32.totalorder %s16, 0
    %p122 = por %p120, %p121
    %s123 = smul.u32 %s18, %s17
    %s124 = smul.u32 %s25, %s29
    %s125 = ssub.s32 %s123, %s124
    %p126 = scmp.eq.s32.totalorder %s125, 0
    %s128 = sadd.s32 %s127, 1
    %s129 = scalar_select %p126, %s127, %s128
    %p132 = pneg %p126
    %p133 = scmp.eq.s32.totalorder %s10, 1
    %p134 = por %p132, %p133
    %p135 = scmp.ne.s32.totalorder %s127, %s130
    %p136 = scmp.eq.s32.totalorder %s10, 0
    %p137 = por %p135, %p136
    %p138 = scmp.ne.s32.totalorder %s127, %s130
    %p139 = scmp.eq.s32.totalorder %s15, 1
    %p140 = por %p138, %p139
    %p141 = scmp.ne.s32.totalorder %s130, %s131
    %p142 = scmp.eq.s32.totalorder %s15, 0
    %p143 = por %p141, %p142
    %p144 = scmp.ne.s32.totalorder %s130, %s131
    %p145 = scmp.eq.s32.totalorder %s16, 1
    %p146 = por %p144, %p145
    %p148 = scmp.ne.s32.totalorder %s131, %s147
    %p149 = scmp.eq.s32.totalorder %s16, 0
    %p150 = por %p148, %p149
    %p151 = scmp.le.s32.totalorder 1, %s10
    %p152 = scmp.lt.s32.totalorder %s10, 3
    %p153 = pnand %p151, %p152
    %p154 = pneg %p153
    // Predicated region
    $region9: #{down_forward.1} parent=5 // pred_check
      _
    $region10: #{down_forward.1} parent=5 // pred_check_branch
      %156 = sbr.rel (%p153) target = $region12
    $region11: #{down_forward.1} parent=5 // pred_region
      %s157 = ssub.s32 %s10, 1
      // Predicated region
      $region13: #{down_forward.1} parent=11 // pred_check
        %p158 = pneg %p73
      $region14: #{down_forward.1} parent=11 // pred_check_branch
        %160 = sbr.rel (%p158) target = $region16
      $region15: #{down_forward.1} parent=11 // pred_region
        _
      $region16: #{down_forward.1} parent=11 // pred_fallthru
        _
      // Predicated region
      $region17: #{down_forward.1} parent=11 // pred_check
        %p161 = pneg %p94
      $region18: #{down_forward.1} parent=11 // pred_check_branch
        %163 = sbr.rel (%p161) target = $region20
      $region19: #{down_forward.1} parent=11 // pred_region
        _
      $region20: #{down_forward.1} parent=11 // pred_fallthru
        _
      // Predicated region
      $region21: #{down_forward.1} parent=11 // pred_check
        %p164 = pneg %p115
      $region22: #{down_forward.1} parent=11 // pred_check_branch
        %166 = sbr.rel (%p164) target = $region24
      $region23: #{down_forward.1} parent=11 // pred_region
        _
      $region24: #{down_forward.1} parent=11 // pred_fallthru
        _
    $region12: #{down_forward.1} parent=5 // pred_fallthru
      _
    %p167 = scmp.lt.s32.totalorder %s10, 2
    // Predicated region
    $region25: #{down_forward.1} parent=5 // pred_check
      %p168 = pneg %p167
    $region26: #{down_forward.1} parent=5 // pred_check_branch
      %170 = sbr.rel (%p168) target = $region28
    $region27: #{down_forward.1} parent=5 // pred_region
      // Predicated region
      $region29: #{down_forward.1} parent=27 // pred_check
        %p171 = pneg %p46
      $region30: #{down_forward.1} parent=27 // pred_check_branch
        %173 = sbr.rel (%p171) target = $region32
      $region31: #{down_forward.1} parent=27 // pred_region
        %s174 = ssub.s32 1, %s17
        %s175 = smul.u32 %s18, %s174
        %s176 = smul.u32 16, %s175
        %p177 = scmp.lt.s32.totalorder %s176, 15
        %s178 = scalar_select %p177, %s176, 15
        %s179 = smul.addr %s178, 4
        %s180 = scalar_lea.vmem %s0, %s179
        %s181 = ssub.s32 1, %s17
        %s182 = smul.u32 %s18, %s181
        %s183 = smul.u32 16, %s182
      $region32: #{down_forward.1} parent=27 // pred_fallthru
        _
    $region28: #{down_forward.1} parent=5 // pred_fallthru
      _
    %p184 = scmp.le.s32.totalorder 1, %s10
    %p185 = scmp.lt.s32.totalorder %s10, 3
    %p186 = pnand %p184, %p185
    %p187 = pneg %p186
    // Predicated region
    $region33: #{down_forward.1} parent=5 // pred_check
      _
    $region34: #{down_forward.1} parent=5 // pred_check_branch
      %189 = sbr.rel (%p186) target = $region36
    $region35: #{down_forward.1} parent=5 // pred_region
      %s190 = ssub.s32 %s10, 1
      %s191 = ssub.s32 1, %s19
      %s192 = smul.u32 %s20, %s191
      %s193 = smul.u32 16, %s192
      %p194 = scmp.lt.s32.totalorder %s193, 15
      %s195 = scalar_select %p194, %s193, 15
      %s196 = smul.addr %s195, 4
      %s197 = scalar_lea.vmem %s0, %s196
      %p198 = pneg %p52
      %p199 = pneg %p49
      %p200 = pneg %p73
      %p201 = pneg %p70
      %p202 = pneg %p94
      %p203 = pneg %p91
      %p204 = pneg %p115
      %p205 = pneg %p112
      %p206 = pneg %p143
      %p207 = pneg %p140
      %s208 = smul.u32 %s20, %s19
      %s209 = smul.u32 16, %s208
      %p210 = scmp.lt.s32.totalorder %s209, 15
      %s211 = scalar_select %p210, %s209, 15
      %s212 = smul.addr %s211, 8
      %s213 = scalar_lea.vmem %s4, %s212
      %s214 = ssub.s32 1, %s19
      %s215 = smul.u32 %s20, %s214
      %s216 = smul.u32 16, %s215
      %p217 = scmp.lt.s32.totalorder %s216, 15
      %s218 = scalar_select %p217, %s216, 15
      %s219 = smul.addr %s218, 4
      %s220 = scalar_lea.vmem %s0, %s219
      %s221 = ssub.s32 1, %s19
      %s222 = smul.u32 %s20, %s221
      %s223 = smul.u32 16, %s222
      %s224 = smul.u32 %s20, %s19
      %s225 = smul.u32 16, %s224
      %p226 = scmp.lt.s32.totalorder %s225, 15
      %s227 = scalar_select %p226, %s225, 15
      %s228 = smul.addr %s227, 8
      %s229 = scalar_lea.vmem %s4, %s228
      %s230 = smul.u32 %s20, %s19
      %s231 = smul.u32 16, %s230
      %s233 = smul.u32 %s20, 128
      %p234 = scmp.eq.s32.totalorder %s19, 0
      // Predicated region
      $region37: #{down_forward.1} parent=35 // pred_check
        %p235 = pneg %p234
      $region38: #{down_forward.1} parent=35 // pred_check_branch
        %237 = sbr.rel (%p235) target = $region40
      $region39: #{down_forward.1} parent=35 // pred_region
        %v238 = vld [vmem:[%s220] sm:$0xf]
        %v239 = vld [vmem:[%s220 + $0x4] sm:$0xf]
        %v240 = vld [vmem:[%s220 + $0x8] sm:$0xf]
        %v241 = vld [vmem:[%s220 + $0xc] sm:$0xf]
        %v242 = vld [vmem:[%s220 + $0x10] sm:$0xf]
        %v243 = vld [vmem:[%s220 + $0x14] sm:$0xf]
        %v244 = vld [vmem:[%s220 + $0x18] sm:$0xf]
        %v245 = vld [vmem:[%s220 + $0x1c] sm:$0xf]
        %v246 = vld [vmem:[%s220 + $0x20] sm:$0xf]
        %v247 = vld [vmem:[%s220 + $0x24] sm:$0xf]
        %v248 = vld [vmem:[%s220 + $0x28] sm:$0xf]
        %v249 = vld [vmem:[%s220 + $0x2c] sm:$0xf]
        %v250 = vld [vmem:[%s220 + $0x30] sm:$0xf]
        %v251 = vld [vmem:[%s220 + $0x34] sm:$0xf]
        %v252 = vld [vmem:[%s220 + $0x38] sm:$0xf]
        %v253 = vld [vmem:[%s220 + $0x3c] sm:$0xf]
        %v254 = vld [vmem:[%s1] sm:$0xf]
        %v255 = vld [vmem:[%s1 + $0x4] sm:$0xf]
        %v256 = vld [vmem:[%s1 + $0x8] sm:$0xf]
        %v257 = vld [vmem:[%s1 + $0xc] sm:$0xf]
        %v258 = vld [vmem:[%s1 + $0x10] sm:$0x3]
        %v275 = vunpack.c.l.b16 %v238
        %v276 = vunpack.c.l.b16 %v239
        %v277 = vunpack.c.l.b16 %v240
        %v278 = vunpack.c.l.b16 %v241
        %v279 = vunpack.c.l.b16 %v242
        %v280 = vunpack.c.l.b16 %v243
        %v281 = vunpack.c.l.b16 %v244
        %v282 = vunpack.c.l.b16 %v245
        %v283 = vunpack.c.l.b16 %v246
        %v284 = vunpack.c.l.b16 %v247
        %v285 = vunpack.c.l.b16 %v248
        %v286 = vunpack.c.l.b16 %v249
        %v287 = vunpack.c.l.b16 %v250
        %v288 = vunpack.c.l.b16 %v251
        %v289 = vunpack.c.l.b16 %v252
        %v290 = vunpack.c.l.b16 %v253
        %v291 = vpack.c.b16 %v276, %v275
        %v292 = vpack.c.b16 %v278, %v277
        %v293 = vpack.c.b16 %v280, %v279
        %v294 = vpack.c.b16 %v282, %v281
        %v295 = vpack.c.b16 %v284, %v283
        %v296 = vpack.c.b16 %v286, %v285
        %v297 = vpack.c.b16 %v288, %v287
        %v298 = vpack.c.b16 %v290, %v289
        %v304 = vunpack.c.l.b16 %v254
        %v305 = vunpack.c.l.b16 %v255
        %v306 = vunpack.c.l.b16 %v256
        %v307 = vunpack.c.l.b16 %v257
        %v308 = vunpack.c.l.b16 %v258
        %v309 = vpack.c.b16 %v305, %v304
        %v310 = vpack.c.b16 %v307, %v306
        %v311 = vpack.c.b16 %v308, %v308
        %vm314 = vcmask 293888
        %v316 = vsel %vm314, %v291, 0
        %v319 = vsel %vm314, %v292, 0
        %v322 = vsel %vm314, %v293, 0
        %v325 = vsel %vm314, %v294, 0
        %v328 = vsel %vm314, %v295, 0
        %v331 = vsel %vm314, %v296, 0
        %v334 = vsel %vm314, %v297, 0
        %v337 = vsel %vm314, %v298, 0
        %vm339 = vcmask 1041408
        %v341 = vsel %vm339, %v311, 0
        %343 = vmatprep.subr.bf16.mxu0 0
        %344 = vmatpush1.bf16.msra.mxu0 %v309
        %345 = vmatprep.subr.bf16.mxu0 0
        %346 = vmatpush1.bf16.msra.mxu0 %v310
        %347 = vmatprep.subr.bf16.mxu0 0
        %348 = vmatpush1.bf16.msra.mxu0 %v341
        %349 = vmatprep.subr.bf16.mxu0 0
        %350 = vmatpush1.bf16.msra.mxu0 0
        %351 = vmatprep.subr.bf16.mxu0 0
        %352 = vmatpush1.bf16.msra.mxu0 0
        %353 = vmatprep.subr.bf16.mxu0 0
        %354 = vmatpush1.bf16.msra.mxu0 0
        %355 = vmatprep.subr.bf16.mxu0 0
        %356 = vmatpush1.bf16.msra.mxu0 0
        %357 = vmatprep.subr.bf16.mxu0 0
        %358 = vmatpush1.bf16.msra.mxu0 0
        %359 = vmatprep.subr.bf16.mxu0 0
        %360 = vmatpush1.bf16.msra.mxu0 0
        %361 = vmatprep.subr.bf16.mxu0 0
        %362 = vmatpush1.bf16.msra.mxu0 0
        %363 = vmatprep.subr.bf16.mxu0 0
        %364 = vmatpush1.bf16.msra.mxu0 0
        %365 = vmatprep.subr.bf16.mxu0 0
        %366 = vmatpush1.bf16.msra.mxu0 0
        %367 = vmatprep.subr.bf16.mxu0 0
        %368 = vmatpush1.bf16.msra.mxu0 0
        %369 = vmatprep.subr.bf16.mxu0 0
        %370 = vmatpush1.bf16.msra.mxu0 0
        %371 = vmatprep.subr.bf16.mxu0 0
        %372 = vmatpush1.bf16.msra.mxu0 0
        %373 = vmatprep.subr.bf16.mxu0 0
        %374 = vmatpush1.bf16.msra.mxu0 0
        %375 = vmatprep.mubr.bf16.mxu0 0
        %376 = vmatmul.mubr.bf16.gmra.mrb[0].mxu0 %v316
        %v377 = vpop.f32.mrb[0].mxu0
        %v378 = vadd.f32 0.0, %v377
        %v379 = vpop.f32.mrb[0].mxu0
        %v380 = vpop.f32.mrb[0].mxu0
        %v381 = vadd.f32 0.0, %v380
        %v382 = vpop.f32.mrb[0].mxu0
        %383 = vmatprep.mubr.bf16.mxu0 0
        %384 = vmatmul.mubr.bf16.gmra.mrb[0].mxu0 %v319
        %v385 = vpop.f32.mrb[0].mxu0
        %v386 = vadd.f32 0.0, %v385
        %v387 = vpop.f32.mrb[0].mxu0
        %v388 = vpop.f32.mrb[0].mxu0
        %v389 = vadd.f32 0.0, %v388
        %v390 = vpop.f32.mrb[0].mxu0
        %391 = vmatprep.mubr.bf16.mxu0 0
        %392 = vmatmul.mubr.bf16.gmra.mrb[0].mxu0 %v322
        %v393 = vpop.f32.mrb[0].mxu0
        %v394 = vadd.f32 0.0, %v393
        %v395 = vpop.f32.mrb[0].mxu0
        %v396 = vpop.f32.mrb[0].mxu0
        %v397 = vadd.f32 0.0, %v396
        %v398 = vpop.f32.mrb[0].mxu0
        %399 = vmatprep.mubr.bf16.mxu0 0
        %400 = vmatmul.mubr.bf16.gmra.mrb[0].mxu0 %v325
        %v401 = vpop.f32.mrb[0].mxu0
        %v402 = vadd.f32 0.0, %v401
        %v403 = vpop.f32.mrb[0].mxu0
        %v404 = vpop.f32.mrb[0].mxu0
        %v405 = vadd.f32 0.0, %v404
        %v406 = vpop.f32.mrb[0].mxu0
        %407 = vmatprep.mubr.bf16.mxu0 0
        %408 = vmatmul.mubr.bf16.gmra.mrb[0].mxu0 %v328
        %v409 = vpop.f32.mrb[0].mxu0
        %v410 = vadd.f32 0.0, %v409
        %v411 = vpop.f32.mrb[0].mxu0
        %v412 = vpop.f32.mrb[0].mxu0
        %v413 = vadd.f32 0.0, %v412
        %v414 = vpop.f32.mrb[0].mxu0
        %415 = vmatprep.mubr.bf16.mxu0 0
        %416 = vmatmul.mubr.bf16.gmra.mrb[0].mxu0 %v331
        %v417 = vpop.f32.mrb[0].mxu0
        %v418 = vadd.f32 0.0, %v417
        %v419 = vpop.f32.mrb[0].mxu0
        %v420 = vpop.f32.mrb[0].mxu0
        %v421 = vadd.f32 0.0, %v420
        %v422 = vpop.f32.mrb[0].mxu0
        %423 = vmatprep.mubr.bf16.mxu0 0
        %424 = vmatmul.mubr.bf16.gmra.mrb[0].mxu0 %v334
        %v425 = vpop.f32.mrb[0].mxu0
        %v426 = vadd.f32 0.0, %v425
        %v427 = vpop.f32.mrb[0].mxu0
        %v428 = vpop.f32.mrb[0].mxu0
        %v429 = vadd.f32 0.0, %v428
        %v430 = vpop.f32.mrb[0].mxu0
        %431 = vmatprep.mubr.bf16.mxu0 0
        %432 = vmatmul.mubr.bf16.gmra.mrb[0].mxu0 %v337
        %v433 = vpop.f32.mrb[0].mxu0
        %v434 = vadd.f32 0.0, %v433
        %v435 = vpop.f32.mrb[0].mxu0
        %v436 = vpop.f32.mrb[0].mxu0
        %v437 = vadd.f32 0.0, %v436
        %v438 = vpop.f32.mrb[0].mxu0
        %439 = vdwg.mxu0
        %s440 = scalar_lea.vmem [#allocation2], %s233
        %441 = vst [vmem:[%s440] sm:$0xff] %v378
        %442 = vst [vmem:[%s440 + $0x8] sm:$0xff] %v381
        %443 = vst [vmem:[%s440 + $0x10] sm:$0xff] %v386
        %444 = vst [vmem:[%s440 + $0x18] sm:$0xff] %v389
        %445 = vst [vmem:[%s440 + $0x20] sm:$0xff] %v394
        %446 = vst [vmem:[%s440 + $0x28] sm:$0xff] %v397
        %447 = vst [vmem:[%s440 + $0x30] sm:$0xff] %v402
        %448 = vst [vmem:[%s440 + $0x38] sm:$0xff] %v405
        %449 = vst [vmem:[%s440 + $0x40] sm:$0xff] %v410
        %450 = vst [vmem:[%s440 + $0x48] sm:$0xff] %v413
        %451 = vst [vmem:[%s440 + $0x50] sm:$0xff] %v418
        %452 = vst [vmem:[%s440 + $0x58] sm:$0xff] %v421
        %453 = vst [vmem:[%s440 + $0x60] sm:$0xff] %v426
        %454 = vst [vmem:[%s440 + $0x68] sm:$0xff] %v429
        %455 = vst [vmem:[%s440 + $0x70] sm:$0xff] %v434
        %456 = vst [vmem:[%s440 + $0x78] sm:$0xff] %v437
        %p457 = scmp.eq.s32.totalorder %s20, 0
        // Predicated region
        $region41: #{down_forward.1} parent=39 // pred_check
          %p458 = pneg %p457
        $region42: #{down_forward.1} parent=39 // pred_check_branch
          %460 = sbr.rel (%p458) target = $region44
        $region43: #{down_forward.1} parent=39 // pred_region
          %v461 = vadd.f32 %v378, %v381
          %v462 = vadd.f32 %v461, %v386
          %v463 = vadd.f32 %v462, %v389
          %v464 = vadd.f32 %v463, %v394
          %v465 = vadd.f32 %v464, %v397
          %v466 = vadd.f32 %v465, %v402
          %v467 = vadd.f32 %v466, %v405
          %v468 = vadd.f32 %v467, %v410
          %v469 = vadd.f32 %v468, %v413
          %v470 = vadd.f32 %v469, %v418
          %v471 = vadd.f32 %v470, %v421
          %v472 = vadd.f32 %v471, %v426
          %v473 = vadd.f32 %v472, %v429
          %v474 = vadd.f32 %v473, %v434
          %v475 = vadd.f32 %v474, %v437
          %v476 = vrot.slane %v475, 4
          %v477 = vadd.f32 %v475, %v476
          %v478 = vrot.slane %v477, 2
          %v479 = vadd.f32 %v477, %v478
          %v480 = vrot.slane %v479, 1
          %v481 = vadd.f32 %v479, %v480
          %v482 = vmul.f32 %v481, 0.0078125
          %483 = vst [vmem:[#allocation3] sm:$0x1] %v482
          %484 = vst [vmem:[#allocation4] sm:$0x1] 0.0
          %485 = vst [vmem:[#allocation5] sm:$0x1] 0.0
        $region44: #{down_forward.1} parent=39 // pred_fallthru
          _
        %v486 = vld [vmem:[#allocation3] sm:$0x1]
        %v488 = vlaneseq
        %v489 = vshrl.u32 %v488, 7
        %v490 = vsub.s32 0, %v489
        %v491 = vrot.slane %v486, %v490
        %v493 = vsub.f32 %v378, %v491
        %v494 = vsub.f32 %v381, %v491
        %v495 = vsub.f32 %v386, %v491
        %v496 = vsub.f32 %v389, %v491
        %v497 = vsub.f32 %v394, %v491
        %v498 = vsub.f32 %v397, %v491
        %v499 = vsub.f32 %v402, %v491
        %v500 = vsub.f32 %v405, %v491
        %v501 = vsub.f32 %v410, %v491
        %v502 = vsub.f32 %v413, %v491
        %v503 = vsub.f32 %v418, %v491
        %v504 = vsub.f32 %v421, %v491
        %v505 = vsub.f32 %v426, %v491
        %v506 = vsub.f32 %v429, %v491
        %v507 = vsub.f32 %v434, %v491
        %v508 = vsub.f32 %v437, %v491
        %v509 = vld [vmem:[#allocation4] sm:$0x1]
        %v510 = vadd.f32 %v493, %v494
        %v511 = vadd.f32 %v510, %v495
        %v512 = vadd.f32 %v511, %v496
        %v513 = vadd.f32 %v512, %v497
        %v514 = vadd.f32 %v513, %v498
        %v515 = vadd.f32 %v514, %v499
        %v516 = vadd.f32 %v515, %v500
        %v517 = vadd.f32 %v516, %v501
        %v518 = vadd.f32 %v517, %v502
        %v519 = vadd.f32 %v518, %v503
        %v520 = vadd.f32 %v519, %v504
        %v521 = vadd.f32 %v520, %v505
        %v522 = vadd.f32 %v521, %v506
        %v523 = vadd.f32 %v522, %v507
        %v524 = vadd.f32 %v523, %v508
        %v525 = vrot.slane %v524, 4
        %v526 = vadd.f32 %v524, %v525
        %v527 = vrot.slane %v526, 2
        %v528 = vadd.f32 %v526, %v527
        %v529 = vrot.slane %v528, 1
        %v530 = vadd.f32 %v528, %v529
        %v531 = vadd.f32 %v509, %v530
        %532 = vst [vmem:[#allocation4] sm:$0x1] %v531
        %v533 = vld [vmem:[#allocation5] sm:$0x1]
        %v534 = vmul.f32 %v493, %v493
        %v535 = vmul.f32 %v494, %v494
        %v536 = vmul.f32 %v495, %v495
        %v537 = vmul.f32 %v496, %v496
        %v538 = vmul.f32 %v497, %v497
        %v539 = vmul.f32 %v498, %v498
        %v540 = vmul.f32 %v499, %v499
        %v541 = vmul.f32 %v500, %v500
        %v542 = vmul.f32 %v501, %v501
        %v543 = vmul.f32 %v502, %v502
        %v544 = vmul.f32 %v503, %v503
        %v545 = vmul.f32 %v504, %v504
        %v546 = vmul.f32 %v505, %v505
        %v547 = vmul.f32 %v506, %v506
        %v548 = vmul.f32 %v507, %v507
        %v549 = vmul.f32 %v508, %v508
        %v550 = vadd.f32 %v534, %v535
        %v551 = vadd.f32 %v550, %v536
        %v552 = vadd.f32 %v551, %v537
        %v553 = vadd.f32 %v552, %v538
        %v554 = vadd.f32 %v553, %v539
        %v555 = vadd.f32 %v554, %v540
        %v556 = vadd.f32 %v555, %v541
        %v557 = vadd.f32 %v556, %v542
        %v558 = vadd.f32 %v557, %v543
        %v559 = vadd.f32 %v558, %v544
        %v560 = vadd.f32 %v559, %v545
        %v561 = vadd.f32 %v560, %v546
        %v562 = vadd.f32 %v561, %v547
        %v563 = vadd.f32 %v562, %v548
        %v564 = vadd.f32 %v563, %v549
        %v565 = vrot.slane %v564, 4
        %v566 = vadd.f32 %v564, %v565
        %v567 = vrot.slane %v566, 2
        %v568 = vadd.f32 %v566, %v567
        %v569 = vrot.slane %v568, 1
        %v570 = vadd.f32 %v568, %v569
        %v571 = vadd.f32 %v533, %v570
        %572 = vst [vmem:[#allocation5] sm:$0x1] %v571
        // Predicated region
        $region45: #{down_forward.1} parent=39 // pred_check
          %p573 = pneg %p457
        $region46: #{down_forward.1} parent=39 // pred_check_branch
          %575 = sbr.rel (%p573) target = $region48
        $region47: #{down_forward.1} parent=39 // pred_region
          %v576 = vld [vmem:[#allocation4] sm:$0x1]
          %v577 = vmul.f32 %v576, 0.0078125
          %v578 = vld [vmem:[#allocation5] sm:$0x1]
          %v579 = vmul.f32 %v578, 0.0078125
          %v580 = vmul.f32 %v577, %v577
          %v581 = vsub.f32 %v579, %v580
          %v582 = vmax.f32 %v581, 0.0
          %v583 = vld [vmem:[%s2] sm:$0x1]
          %v584 = vadd.f32 %v582, 1e-05
          %v585 = vrsqrt.pop %v584
          %v586 = vmul.f32 %v583, %v585
          %587 = vst [vmem:[#allocation6] sm:$0x1] %v586
          %v588 = vld [vmem:[%s3] sm:$0x1]
          %v589 = vld [vmem:[#allocation3] sm:$0x1]
          %v590 = vadd.f32 %v589, %v577
          %v591 = vmul.f32 %v590, %v586
          %v592 = vsub.f32 %v588, %v591
          %593 = vst [vmem:[#allocation7] sm:$0x1] %v592
        $region48: #{down_forward.1} parent=39 // pred_fallthru
          _
      $region40: #{down_forward.1} parent=35 // pred_fallthru
        _
      %p594 = scmp.eq.s32.totalorder %s19, 1
      // Predicated region
      $region49: #{down_forward.1} parent=35 // pred_check
        %p595 = pneg %p594
      $region50: #{down_forward.1} parent=35 // pred_check_branch
        %597 = sbr.rel (%p595) target = $region52
      $region51: #{down_forward.1} parent=35 // pred_region
        %s598 = scalar_lea.vmem [#allocation2], %s233
        %v599 = vld [vmem:[%s598] sm:$0xff]
        %v600 = vld [vmem:[%s598 + $0x8] sm:$0xff]
        %v601 = vld [vmem:[%s598 + $0x10] sm:$0xff]
        %v602 = vld [vmem:[%s598 + $0x18] sm:$0xff]
        %v603 = vld [vmem:[%s598 + $0x20] sm:$0xff]
        %v604 = vld [vmem:[%s598 + $0x28] sm:$0xff]
        %v605 = vld [vmem:[%s598 + $0x30] sm:$0xff]
        %v606 = vld [vmem:[%s598 + $0x38] sm:$0xff]
        %v607 = vld [vmem:[%s598 + $0x40] sm:$0xff]
        %v608 = vld [vmem:[%s598 + $0x48] sm:$0xff]
        %v609 = vld [vmem:[%s598 + $0x50] sm:$0xff]
        %v610 = vld [vmem:[%s598 + $0x58] sm:$0xff]
        %v611 = vld [vmem:[%s598 + $0x60] sm:$0xff]
        %v612 = vld [vmem:[%s598 + $0x68] sm:$0xff]
        %v613 = vld [vmem:[%s598 + $0x70] sm:$0xff]
        %v614 = vld [vmem:[%s598 + $0x78] sm:$0xff]
        %v615 = vld [vmem:[#allocation6] sm:$0x1]
        %v617 = vlaneseq
        %v618 = vshrl.u32 %v617, 7
        %v619 = vsub.s32 0, %v618
        %v620 = vrot.slane %v615, %v619
        %v622 = vmul.f32 %v599, %v620
        %v623 = vmul.f32 %v600, %v620
        %v624 = vmul.f32 %v601, %v620
        %v625 = vmul.f32 %v602, %v620
        %v626 = vmul.f32 %v603, %v620
        %v627 = vmul.f32 %v604, %v620
        %v628 = vmul.f32 %v605, %v620
        %v629 = vmul.f32 %v606, %v620
        %v630 = vmul.f32 %v607, %v620
        %v631 = vmul.f32 %v608, %v620
        %v632 = vmul.f32 %v609, %v620
        %v633 = vmul.f32 %v610, %v620
        %v634 = vmul.f32 %v611, %v620
        %v635 = vmul.f32 %v612, %v620
        %v636 = vmul.f32 %v613, %v620
        %v637 = vmul.f32 %v614, %v620
        %v638 = vld [vmem:[#allocation7] sm:$0x1]
        %v640 = vlaneseq
        %v641 = vshrl.u32 %v640, 7
        %v642 = vsub.s32 0, %v641
        %v643 = vrot.slane %v638, %v642
        %v645 = vadd.f32 %v622, %v643
        %v646 = vadd.f32 %v623, %v643
        %v647 = vadd.f32 %v624, %v643
        %v648 = vadd.f32 %v625, %v643
        %v649 = vadd.f32 %v626, %v643
        %v650 = vadd.f32 %v627, %v643
        %v651 = vadd.f32 %v628, %v643
        %v652 = vadd.f32 %v629, %v643
        %v653 = vadd.f32 %v630, %v643
        %v654 = vadd.f32 %v631, %v643
        %v655 = vadd.f32 %v632, %v643
        %v656 = vadd.f32 %v633, %v643
        %v657 = vadd.f32 %v634, %v643
        %v658 = vadd.f32 %v635, %v643
        %v659 = vadd.f32 %v636, %v643
        %v660 = vadd.f32 %v637, %v643
        %vm661 = vcmp.ge.f32.partialorder %v645, 0.0
        %vm662 = vcmp.ge.f32.partialorder %v646, 0.0
        %vm663 = vcmp.ge.f32.partialorder %v647, 0.0
        %vm664 = vcmp.ge.f32.partialorder %v648, 0.0
        %vm665 = vcmp.ge.f32.partialorder %v649, 0.0
        %vm666 = vcmp.ge.f32.partialorder %v650, 0.0
        %vm667 = vcmp.ge.f32.partialorder %v651, 0.0
        %vm668 = vcmp.ge.f32.partialorder %v652, 0.0
        %vm669 = vcmp.ge.f32.partialorder %v653, 0.0
        %vm670 = vcmp.ge.f32.partialorder %v654, 0.0
        %vm671 = vcmp.ge.f32.partialorder %v655, 0.0
        %vm672 = vcmp.ge.f32.partialorder %v656, 0.0
        %vm673 = vcmp.ge.f32.partialorder %v657, 0.0
        %vm674 = vcmp.ge.f32.partialorder %v658, 0.0
        %vm675 = vcmp.ge.f32.partialorder %v659, 0.0
        %vm676 = vcmp.ge.f32.partialorder %v660, 0.0
        %v677 = vmul.f32 %v645, 0.01
        %v678 = vmul.f32 %v646, 0.01
        %v679 = vmul.f32 %v647, 0.01
        %v680 = vmul.f32 %v648, 0.01
        %v681 = vmul.f32 %v649, 0.01
        %v682 = vmul.f32 %v650, 0.01
        %v683 = vmul.f32 %v651, 0.01
        %v684 = vmul.f32 %v652, 0.01
        %v685 = vmul.f32 %v653, 0.01
        %v686 = vmul.f32 %v654, 0.01
        %v687 = vmul.f32 %v655, 0.01
        %v688 = vmul.f32 %v656, 0.01
        %v689 = vmul.f32 %v657, 0.01
        %v690 = vmul.f32 %v658, 0.01
        %v691 = vmul.f32 %v659, 0.01
        %v692 = vmul.f32 %v660, 0.01
        %v693 = vsel %vm661, %v645, %v677
        %v694 = vsel %vm662, %v646, %v678
        %v695 = vsel %vm663, %v647, %v679
        %v696 = vsel %vm664, %v648, %v680
        %v697 = vsel %vm665, %v649, %v681
        %v698 = vsel %vm666, %v650, %v682
        %v699 = vsel %vm667, %v651, %v683
        %v700 = vsel %vm668, %v652, %v684
        %v701 = vsel %vm669, %v653, %v685
        %v702 = vsel %vm670, %v654, %v686
        %v703 = vsel %vm671, %v655, %v687
        %v704 = vsel %vm672, %v656, %v688
        %v705 = vsel %vm673, %v657, %v689
        %v706 = vsel %vm674, %v658, %v690
        %v707 = vsel %vm675, %v659, %v691
        %v708 = vsel %vm676, %v660, %v692
        %709 = vst [vmem:[%s229] sm:$0xff] %v693
        %710 = vst [vmem:[%s229 + $0x8] sm:$0xff] %v694
        %711 = vst [vmem:[%s229 + $0x10] sm:$0xff] %v695
        %712 = vst [vmem:[%s229 + $0x18] sm:$0xff] %v696
        %713 = vst [vmem:[%s229 + $0x20] sm:$0xff] %v697
        %714 = vst [vmem:[%s229 + $0x28] sm:$0xff] %v698
        %715 = vst [vmem:[%s229 + $0x30] sm:$0xff] %v699
        %716 = vst [vmem:[%s229 + $0x38] sm:$0xff] %v700
        %717 = vst [vmem:[%s229 + $0x40] sm:$0xff] %v701
        %718 = vst [vmem:[%s229 + $0x48] sm:$0xff] %v702
        %719 = vst [vmem:[%s229 + $0x50] sm:$0xff] %v703
        %720 = vst [vmem:[%s229 + $0x58] sm:$0xff] %v704
        %721 = vst [vmem:[%s229 + $0x60] sm:$0xff] %v705
        %722 = vst [vmem:[%s229 + $0x68] sm:$0xff] %v706
        %723 = vst [vmem:[%s229 + $0x70] sm:$0xff] %v707
        %724 = vst [vmem:[%s229 + $0x78] sm:$0xff] %v708
      $region52: #{down_forward.1} parent=35 // pred_fallthru
        _
      %s725 = smul.u32 %s20, %s19
      %s726 = smul.u32 16, %s725
      %p727 = scmp.lt.s32.totalorder %s726, 15
      %s728 = scalar_select %p727, %s726, 15
      %s729 = smul.addr %s728, 8
      %s730 = scalar_lea.vmem %s4, %s729
      // Predicated region
      $region53: #{down_forward.1} parent=35 // pred_check
        %p731 = pneg %p140
      $region54: #{down_forward.1} parent=35 // pred_check_branch
        %733 = sbr.rel (%p731) target = $region56
      $region55: #{down_forward.1} parent=35 // pred_region
        %s734 = smul.u32 %s20, %s19
        %s735 = smul.u32 16, %s734
      $region56: #{down_forward.1} parent=35 // pred_fallthru
        _
    $region36: #{down_forward.1} parent=5 // pred_fallthru
      _
    %p736 = scmp.le.s32.totalorder 2, %s10
    // Predicated region
    $region57: #{down_forward.1} parent=5 // pred_check
      %p737 = pneg %p736
    $region58: #{down_forward.1} parent=5 // pred_check_branch
      %739 = sbr.rel (%p737) target = $region60
    $region59: #{down_forward.1} parent=5 // pred_region
      %s740 = ssub.s32 %s10, 2
      // Predicated region
      $region61: #{down_forward.1} parent=59 // pred_check
        %p741 = pneg %p146
      $region62: #{down_forward.1} parent=59 // pred_check_branch
        %743 = sbr.rel (%p741) target = $region64
      $region63: #{down_forward.1} parent=59 // pred_region
        %s744 = smul.u32 %s22, %s21
        %s745 = smul.u32 16, %s744
        %p746 = scmp.lt.s32.totalorder %s745, 15
        %s747 = scalar_select %p746, %s745, 15
        %s748 = smul.addr %s747, 8
        %s749 = scalar_lea.vmem %s4, %s748
      $region64: #{down_forward.1} parent=59 // pred_fallthru
        _
    $region60: #{down_forward.1} parent=5 // pred_fallthru
      _
  $region6: #{down_forward.1} parent=0 // loop_footer
    %s14 = sadd.s32 1, %s10
  $region7: #{down_forward.1} parent=0 // loop_footer_branch
    %9 = sbr.rel target = $region3
  $region8: #{down_forward.1} parent=0 // loop_exit
    _

</llo_original>
